<compile_context>
chip_gen: v7x
topology: tpu7x:2x2x1
jax: 0.10.0
libtpu: 0.0.40
codegen_flags: <defaults>
</compile_context>

<pallas_src>
import functools

import jax
import jax.numpy as jnp
from jax import lax
from jax.experimental import pallas as pl
from jax.experimental.pallas import tpu as pltpu


# ----------------------------- kernel 1 ------------------------------------- #

def _qkv_proj_kernel(x_ref, w_ref, b_ref, k_ref, q_ref, v_ref, *, d_internal):
    """Fused QKV projection.

    grid = (n_q, H), head axis innermost: the x tile's block index is constant
    across the inner h loop so it is DMA'd only once per row tile.  The stacked
    per-head [Wk|Wq|Wv] weight has a constant index_map (VMEM-resident) and is
    sliced per head with a dynamic first-axis index.  1/sqrt(d_k) is pre-folded
    into the Q columns of weight and bias by the wrapper.
    """
    h = pl.program_id(1)
    x = x_ref[...].astype(w_ref.dtype)                    # cast in-register (bf16 path)
    acc = jnp.dot(x, w_ref[h], preferred_element_type=jnp.float32) + b_ref[h]
    d = d_internal
    k_ref[...] = acc[:, 0 * d:1 * d].astype(k_ref.dtype)
    q_ref[...] = acc[:, 1 * d:2 * d].astype(q_ref.dtype)
    v_ref[...] = acc[:, 2 * d:3 * d].astype(v_ref.dtype)


# ----------------------------- kernel 2 ------------------------------------- #

def _flash_mha_kernel(q_ref, k_ref, v_ref, wc_ref, bc_ref, o_ref,
                      m_sc, l_sc, acc_sc, *, tq, tk):
    """Online-softmax causal attention (all heads fused) + fused output proj."""
    qi = pl.program_id(0)
    ki = pl.program_id(1)
    nk = pl.num_programs(1)

    @pl.when(ki == 0)
    def _init():
        m_sc[...] = jnp.full(m_sc.shape, -jnp.inf, m_sc.dtype)
        l_sc[...] = jnp.zeros(l_sc.shape, l_sc.dtype)
        acc_sc[...] = jnp.zeros(acc_sc.shape, acc_sc.dtype)

    row0 = qi * tq                     # first query row of this tile
    col0 = ki * tk                     # first key col of this tile
    col_last = col0 + tk - 1           # last key col of this tile

    def _update(masked):
        q = q_ref[...]                                       # (H, tq, d)  compute dtype
        k = k_ref[...]                                       # (H, tk, d)
        v = v_ref[...]                                       # (H, tk, d)
        s = jnp.einsum("hqd,hkd->hqk", q, k,
                       preferred_element_type=jnp.float32)   # (H, tq, tk) f32
        if masked:
            # Only diagonal-straddling tiles pay for the element-level mask.
            row = row0 + lax.broadcasted_iota(jnp.int32, (tq, tk), 0)
            col = col0 + lax.broadcasted_iota(jnp.int32, (tq, tk), 1)
            s = jnp.where(col <= row, s, -jnp.inf)
        m_prev = m_sc[...]
        m_new = jnp.maximum(m_prev, s.max(axis=-1, keepdims=True))
        alpha = jnp.exp(m_prev - m_new)
        p = jnp.exp(s - m_new)
        l_sc[...] = alpha * l_sc[...] + p.sum(axis=-1, keepdims=True)
        acc_sc[...] = alpha * acc_sc[...] + jnp.einsum(
            "hqk,hkd->hqd", p.astype(v.dtype), v,
            preferred_element_type=jnp.float32)
        m_sc[...] = m_new

    # Interior lower-triangle tile: no element mask needed.
    @pl.when(col_last <= row0)
    def _interior():
        _update(masked=False)

    # Diagonal-straddling tile: apply causal mask.  Fully above-diagonal tiles
    # fall through both branches (and their K/V DMAs were clamped away).
    @pl.when(jnp.logical_and(col_last > row0, col0 <= row0 + tq - 1))
    def _straddle():
        _update(masked=True)

    @pl.when(ki == nk - 1)
    def _finalize():
        # Exact normalization, then "per-head wo -> concat -> linear1" already
        # folded into a single per-head weight w_comb: sum_h ctx_h @ w_comb[h].
        ctx = acc_sc[...] * pl.reciprocal(l_sc[...], approx=False)   # (H, tq, d) f32
        y = jnp.einsum("hqd,hdm->hqm", ctx.astype(wc_ref.dtype), wc_ref[...],
                       preferred_element_type=jnp.float32)           # (H, tq, dm)
        o_ref[...] = (jnp.sum(y, axis=0) + bc_ref[...]).astype(o_ref.dtype)


# ----------------------------- wrapper -------------------------------------- #

def multi_head_attention(x, params, *, tq=None, tk=None,
                         compute_dtype=jnp.bfloat16):
    """x: (T, d_model) f32.  params: stacked per-head weights (see init_params)."""
    T, d_model = x.shape
    H, _, d_internal = params["wk"].shape
    d_out = params["wo"].shape[-1]
    assert H * d_out == d_model

    # 128 matches the v5e MXU; on v6e/v7x sweep up to 256 (VMEM permitting).
    tq = min(T, 128) if tq is None else tq
    tk = min(T, 128) if tk is None else tk
    assert T % tq == 0 and T % tk == 0
    n_q, n_k = T // tq, T // tk

    scale = float(d_internal) ** -0.5

    # ---- Offline weight algebra (f32), matmul operands cast to compute_dtype ----
    # Stacked [Wk | Wq*scale | Wv] per head, so kernel 1 is one wide matmul/step.
    w_qkv = jnp.concatenate(
        [params["wk"], params["wq"] * scale, params["wv"]], axis=-1)      # (H, dm, 3d)
    b_qkv = jnp.concatenate(
        [params["bk"], params["bq"] * scale, params["bv"]], axis=-1)      # (H, 1, 3d)
    # Fold per-head wo into linear1:
    #   concat_h(ctx_h@wo_h + bo_h) @ W1 + b1
    #     == sum_h ctx_h @ (wo_h @ W1_h)  +  (sum_h bo_h @ W1_h + b1)
    w1h = params["w1"].reshape(H, d_out, d_model)
    w_comb = jnp.einsum("hio,hom->him", params["wo"], w1h)                # (H, d, dm)
    b_comb = jnp.einsum("hxo,hom->xm", params["bo"], w1h) + params["b1"]  # (1, dm)

    w_qkv_c = w_qkv.astype(compute_dtype)
    w_comb_c = w_comb.astype(compute_dtype)

    # ---- Kernel 1: fused QKV projection (x streamed once, weight resident) ----
    k, q, v = pl.pallas_call(
        functools.partial(_qkv_proj_kernel, d_internal=d_internal),
        grid=(n_q, H),
        in_specs=[
            pl.BlockSpec((tq, d_model), lambda i, h: (i, 0)),               # x tile
            pl.BlockSpec((H, d_model, 3 * d_internal), lambda i, h: (0, 0, 0)),  # W (resident)
            pl.BlockSpec((H, 1, 3 * d_internal), lambda i, h: (0, 0, 0)),        # b (resident)
        ],
        out_specs=[
            pl.BlockSpec((None, tq, d_internal), lambda i, h: (h, i, 0)),   # K
            pl.BlockSpec((None, tq, d_internal), lambda i, h: (h, i, 0)),   # Q (pre-scaled)
            pl.BlockSpec((None, tq, d_internal), lambda i, h: (h, i, 0)),   # V
        ],
        out_shape=[
            jax.ShapeDtypeStruct((H, T, d_internal), compute_dtype),
            jax.ShapeDtypeStruct((H, T, d_internal), compute_dtype),
            jax.ShapeDtypeStruct((H, T, d_internal), compute_dtype),
        ],
        compiler_params=pltpu.CompilerParams(
            dimension_semantics=("parallel", "parallel")),
    )(x, w_qkv_c, b_qkv)

    # ---- Kernel 2: flash attention + fused (wo ∘ linear1) projection ----
    # Clamp K/V block indices to the last causally-needed tile so skipped
    # upper-triangle grid steps issue no new DMA.
    def _last_kv_block(qi):
        return (qi * tq + tq - 1) // tk

    def _kv_index(qi, ki):
        return (0, jnp.minimum(ki, _last_kv_block(qi)), 0)

    out = pl.pallas_call(
        functools.partial(_flash_mha_kernel, tq=tq, tk=tk),
        grid=(n_q, n_k),
        in_specs=[
            pl.BlockSpec((H, tq, d_internal), lambda qi, ki: (0, qi, 0)),   # Q
            pl.BlockSpec((H, tk, d_internal), _kv_index),                   # K (clamped)
            pl.BlockSpec((H, tk, d_internal), _kv_index),                   # V (clamped)
            pl.BlockSpec((H, d_internal, d_model), lambda qi, ki: (0, 0, 0)),  # w_comb
            pl.BlockSpec((1, d_model), lambda qi, ki: (0, 0)),                 # b_comb
        ],
        out_specs=pl.BlockSpec((tq, d_model), lambda qi, ki: (qi, 0)),
        out_shape=jax.ShapeDtypeStruct((T, d_model), x.dtype),
        scratch_shapes=[
            pltpu.VMEM((H, tq, 1), jnp.float32),            # running max m
            pltpu.VMEM((H, tq, 1), jnp.float32),            # running sum l
            pltpu.VMEM((H, tq, d_internal), jnp.float32),   # accumulator
        ],
        compiler_params=pltpu.CompilerParams(
            dimension_semantics=("parallel", "arbitrary"),
            # Explicit VMEM budget; raise (and/or tile d_model / split heads)
            # for large d_model, especially on v7x's 64 MiB parts.
            vmem_limit_bytes=32 * 1024 * 1024),
    )(q, k, v, w_comb_c, b_comb)
    return out


# ------------------------- params & reference ------------------------------- #

def init_params(key, d_model, num_heads, d_internal):
    """Per-head weights stacked on a leading head axis; W stored as (in, out)."""
    d_out = d_model // num_heads

    def lin(k, fan_in, fan_out, batch=None):
        kw, kb = jax.random.split(k)
        bound = 1.0 / jnp.sqrt(fan_in)
        w_shape = (fan_in, fan_out) if batch is None else (batch, fan_in, fan_out)
        b_shape = (1, fan_out) if batch is None else (batch, 1, fan_out)
        w = jax.random.uniform(kw, w_shape, jnp.float32, -bound, bound)
        b = jax.random.uniform(kb, b_shape, jnp.float32, -bound, bound)
        return w, b

    ks = jax.random.split(key, 5)
    wk, bk = lin(ks[0], d_model, d_internal, batch=num_heads)
    wq, bq = lin(ks[1], d_model, d_internal, batch=num_heads)
    wv, bv = lin(ks[2], d_model, d_internal, batch=num_heads)
    wo, bo = lin(ks[3], d_internal, d_out, batch=num_heads)
    w1, b1 = lin(ks[4], d_model, d_model)
    return dict(wk=wk, bk=bk, wq=wq, bq=bq, wv=wv, bv=bv,
                wo=wo, bo=bo, w1=w1, b1=b1)


def mha_reference(x, p):
    """Plain-JAX f32 reference mirroring the PyTorch MultiHeadAttention forward."""
    H = p["wk"].shape[0]
    T = x.shape[0]
    tril = jnp.tril(jnp.ones((T, T)))
    outs = []
    for h in range(H):
        k = x @ p["wk"][h] + p["bk"][h]
        q = x @ p["wq"][h] + p["bq"][h]
        v = x @ p["wv"][h] + p["bv"][h]
        d_k = k.shape[-1]
        w = (q @ k.T) * (d_k ** -0.5)
        w = jnp.where(tril == 0, -jnp.inf, w)
        a = jax.nn.softmax(w, axis=-1)
        outs.append((a @ v) @ p["wo"][h] + p["bo"][h])
    cat = jnp.concatenate(outs, axis=-1)
    return cat @ p["w1"] + p["b1"]


# ----------------------------------- main ------------------------------------ #

if __name__ == "__main__":
    seq_length, d_model, num_heads, d_internal = 8, 32, 4, 16

    key = jax.random.PRNGKey(0)
    kx, kp = jax.random.split(key)
    x = jax.random.normal(kx, (seq_length, d_model), jnp.float32)
    params = init_params(kp, d_model, num_heads, d_internal)

    ref = mha_reference(x, params)

    # Default bf16 MXU path (f32 accumulation): loose tolerance vs f32 reference.
    out = jax.block_until_ready(multi_head_attention(x, params))
    assert out.shape == (seq_length, d_model)
    assert jnp.allclose(out, ref, atol=3e-2, rtol=3e-2)

    # f32 path: tight parity with the PyTorch-style reference.
    out_f32 = jax.block_until_ready(
        multi_head_attention(x, params, compute_dtype=jnp.float32))
    assert jnp.allclose(out_f32, ref, atol=1e-3, rtol=1e-3)

    print("KERNEL_OK")
</pallas_src>

<mosaic_0001>
module attributes {stable_mosaic.version = 11 : i64} {
  func.func @_qkv_proj_kernel(%arg0: i32, %arg1: i32, %arg2: memref<8x32xf32, #tpu.memory_space<vmem>>, %arg3: memref<4x32x48xbf16, #tpu.memory_space<vmem>>, %arg4: memref<4x1x48xf32, #tpu.memory_space<vmem>>, %arg5: memref<1x8x16xbf16, #tpu.memory_space<vmem>>, %arg6: memref<1x8x16xbf16, #tpu.memory_space<vmem>>, %arg7: memref<1x8x16xbf16, #tpu.memory_space<vmem>>) attributes {dimension_semantics = [#tpu.dimension_semantics<parallel>, #tpu.dimension_semantics<parallel>], iteration_bounds = array<i64: 1, 4>, scalar_prefetch = 0 : i64, scratch_operands = 0 : i64, tpu.core_type = #tpu.core_type<tc>, window_params = [{transform_indices = @transform_0, window_bounds = array<i64: 8, 32>}, {pipeline_mode = #tpu.pipeline_mode<synchronous>, transform_indices = @transform_1, window_bounds = array<i64: 4, 32, 48>}, {pipeline_mode = #tpu.pipeline_mode<synchronous>, transform_indices = @transform_2, window_bounds = array<i64: 4, 1, 48>}, {transform_indices = @transform_3, window_bounds = array<i64: 1, 8, 16>}, {transform_indices = @transform_4, window_bounds = array<i64: 1, 8, 16>}, {transform_indices = @transform_5, window_bounds = array<i64: 1, 8, 16>}]} {
    %c0 = arith.constant 0 : index
    %c0_0 = arith.constant 0 : index
    %0 = vector.load %arg2[%c0, %c0_0] : memref<8x32xf32, #tpu.memory_space<vmem>>, vector<8x32xf32>
    %1 = arith.truncf %0 : vector<8x32xf32> to vector<8x32xbf16>
    %2 = arith.index_cast %arg1 : i32 to index
    %c0_1 = arith.constant 0 : index
    %c0_2 = arith.constant 0 : index
    %3 = vector.load %arg3[%2, %c0_1, %c0_2] : memref<4x32x48xbf16, #tpu.memory_space<vmem>>, vector<1x32x48xbf16>
    %4 = vector.shape_cast %3 : vector<1x32x48xbf16> to vector<32x48xbf16>
    %cst = arith.constant dense<0.000000e+00> : vector<8x48xf32>
    %5 = tpu.matmul %1, %4, %cst {dimension_numbers = #tpu.dot_dimension_numbers<[1], [0], [0], [1], [0, 0, 1, 1], [], []>} : vector<8x32xbf16>, vector<32x48xbf16>, vector<8x48xf32> -> vector<8x48xf32>
    %6 = arith.index_cast %arg1 : i32 to index
    %c0_3 = arith.constant 0 : index
    %c0_4 = arith.constant 0 : index
    %7 = vector.load %arg4[%6, %c0_3, %c0_4] : memref<4x1x48xf32, #tpu.memory_space<vmem>>, vector<1x1x48xf32>
    %8 = vector.shape_cast %7 : vector<1x1x48xf32> to vector<1x48xf32>
    %9 = vector.broadcast %8 : vector<1x48xf32> to vector<8x48xf32>
    %10 = arith.addf %5, %9 : vector<8x48xf32>
    %11 = vector.extract_strided_slice %10 {offsets = [0, 0], sizes = [8, 16], strides = [1, 1]} : vector<8x48xf32> to vector<8x16xf32>
    %12 = arith.truncf %11 : vector<8x16xf32> to vector<8x16xbf16>
    %c0_5 = arith.constant 0 : index
    %c0_6 = arith.constant 0 : index
    %c0_7 = arith.constant 0 : index
    %13 = vector.load %arg5[%c0_5, %c0_6, %c0_7] : memref<1x8x16xbf16, #tpu.memory_space<vmem>>, vector<1x8x16xbf16>
    %14 = vector.shape_cast %13 : vector<1x8x16xbf16> to vector<8x16xbf16>
    %15 = vector.shape_cast %12 : vector<8x16xbf16> to vector<1x8x16xbf16>
    tpu.vector_store %arg5[%c0_5, %c0_6, %c0_7], %15 {strides = array<i32>} : memref<1x8x16xbf16, #tpu.memory_space<vmem>>, vector<1x8x16xbf16>,
    %16 = vector.extract_strided_slice %10 {offsets = [0, 16], sizes = [8, 16], strides = [1, 1]} : vector<8x48xf32> to vector<8x16xf32>
    %17 = arith.truncf %16 : vector<8x16xf32> to vector<8x16xbf16>
    %c0_8 = arith.constant 0 : index
    %c0_9 = arith.constant 0 : index
    %c0_10 = arith.constant 0 : index
    %18 = vector.load %arg6[%c0_8, %c0_9, %c0_10] : memref<1x8x16xbf16, #tpu.memory_space<vmem>>, vector<1x8x16xbf16>
    %19 = vector.shape_cast %18 : vector<1x8x16xbf16> to vector<8x16xbf16>
    %20 = vector.shape_cast %17 : vector<8x16xbf16> to vector<1x8x16xbf16>
    tpu.vector_store %arg6[%c0_8, %c0_9, %c0_10], %20 {strides = array<i32>} : memref<1x8x16xbf16, #tpu.memory_space<vmem>>, vector<1x8x16xbf16>,
    %21 = vector.extract_strided_slice %10 {offsets = [0, 32], sizes = [8, 16], strides = [1, 1]} : vector<8x48xf32> to vector<8x16xf32>
    %22 = arith.truncf %21 : vector<8x16xf32> to vector<8x16xbf16>
    %c0_11 = arith.constant 0 : index
    %c0_12 = arith.constant 0 : index
    %c0_13 = arith.constant 0 : index
    %23 = vector.load %arg7[%c0_11, %c0_12, %c0_13] : memref<1x8x16xbf16, #tpu.memory_space<vmem>>, vector<1x8x16xbf16>
    %24 = vector.shape_cast %23 : vector<1x8x16xbf16> to vector<8x16xbf16>
    %25 = vector.shape_cast %22 : vector<8x16xbf16> to vector<1x8x16xbf16>
    tpu.vector_store %arg7[%c0_11, %c0_12, %c0_13], %25 {strides = array<i32>} : memref<1x8x16xbf16, #tpu.memory_space<vmem>>, vector<1x8x16xbf16>,
    return
  }
  func.func @transform_0(%arg0: i32, %arg1: i32) -> (i32, i32) {
    %c0_i32 = arith.constant 0 : i32
    %c0_i32_0 = arith.constant 0 : i32
    return %arg0, %c0_i32 : i32, i32
  }
  func.func @transform_1(%arg0: i32, %arg1: i32) -> (i32, i32, i32) {
    %c0_i32 = arith.constant 0 : i32
    %c0_i32_0 = arith.constant 0 : i32
    %c0_i32_1 = arith.constant 0 : i32
    %c0_i32_2 = arith.constant 0 : i32
    return %c0_i32, %c0_i32_0, %c0_i32_1 : i32, i32, i32
  }
  func.func @transform_2(%arg0: i32, %arg1: i32) -> (i32, i32, i32) {
    %c0_i32 = arith.constant 0 : i32
    %c0_i32_0 = arith.constant 0 : i32
    %c0_i32_1 = arith.constant 0 : i32
    %c0_i32_2 = arith.constant 0 : i32
    return %c0_i32, %c0_i32_0, %c0_i32_1 : i32, i32, i32
  }
  func.func @transform_3(%arg0: i32, %arg1: i32) -> (i32, i32, i32) {
    %c0_i32 = arith.constant 0 : i32
    %c0_i32_0 = arith.constant 0 : i32
    return %arg1, %arg0, %c0_i32 : i32, i32, i32
  }
  func.func @transform_4(%arg0: i32, %arg1: i32) -> (i32, i32, i32) {
    %c0_i32 = arith.constant 0 : i32
    %c0_i32_0 = arith.constant 0 : i32
    return %arg1, %arg0, %c0_i32 : i32, i32, i32
  }
  func.func @transform_5(%arg0: i32, %arg1: i32) -> (i32, i32, i32) {
    %c0_i32 = arith.constant 0 : i32
    %c0_i32_0 = arith.constant 0 : i32
    return %arg1, %arg0, %c0_i32 : i32, i32, i32
  }
}

</mosaic_0001>

<llo_original>
// kernel: tpu_custom_call.1
$region0: #{tpu_custom_call.1}
  #allocation0 [shape = 'u32[]', space=smem, size = 0x4, offset = 0x4, fixed_abs, tag = 'smem constant byte address 0x4 - core index']
  #allocation1 [shape = 'u32[144,128]{1,0:T(1,128)}', space=vmem, size = 0x12000, scoped, tag = 'internal scratch']
  %s0 = inlined_call_operand.hbm [shape: f32[8,32], index: 0, kind: input, shape index: {}]
  %s1 = inlined_call_operand.hbm [shape: bf16[4,32,48], index: 1, kind: input, shape index: {}]
  %s2 = inlined_call_operand.vmem [shape: f32[4,1,48], index: 2, kind: input, shape index: {}]
  %s3 = inlined_call_operand.hbm [shape: bf16[4,8,16], index: 3, kind: output, shape index: {0}]
  %s4 = inlined_call_operand.hbm [shape: bf16[4,8,16], index: 4, kind: output, shape index: {1}]
  %s5 = inlined_call_operand.hbm [shape: bf16[4,8,16], index: 5, kind: output, shape index: {2}]
  %6 = xla_tuple %s3, %s4, %s5
  %s7 = sld [smem:[#allocation0]]
  $region69: #{tpu_custom_call.1} parent=0
    _
  %s9 = ssub.s32 1, %s7
  %s10 = scalar_select 0, %s9, %s7
  $region1: #{tpu_custom_call.1} parent=0
    #allocation2 [shape = 'u8[4096]{0}', space=vmem, size = 0x1000, scoped, tag = 'input window, operand 0, single buffered']
    #allocation3 [shape = 's32[2]{0}', space=sflag, size = 0x8, scoped, tag = 'scoped memory for tpu_custom_call.1']
    #allocation4 [shape = 's32[2]{0}', space=sflag, size = 0x8, scoped, tag = 'scoped memory for tpu_custom_call.1']
    #allocation5 [shape = 'u8[32768]{0}', space=vmem, size = 0x8000, scoped, tag = 'input window, operand 1, single buffered']
    #allocation6 [shape = 's32[1]{0}', space=sflag, size = 0x4, scoped, tag = 'scoped memory for tpu_custom_call.1']
    #allocation7 [shape = 'u8[4096]{0}', space=vmem, size = 0x1000, scoped, tag = 'output window, operand 0']
    #allocation8 [shape = 'u8[4096]{0}', space=vmem, size = 0x1000, scoped, tag = 'output window, operand 1']
    #allocation9 [shape = 's32[2]{0}', space=sflag, size = 0x8, scoped, tag = 'scoped memory for tpu_custom_call.1']
    #allocation10 [shape = 'u8[4096]{0}', space=vmem, size = 0x1000, scoped, tag = 'output window, operand 2']
    %11 = vsyncpa [#allocation3], 0
    %12 = vsyncpa [#allocation6], 0
    %13 = vsyncpa [#allocation4], 0
    %s14 = scalar_lea.sflag [#allocation4], 1
    %15 = vsyncpa %s14, 0
    %16 = vsyncpa [#allocation9], 0
    %s17 = scalar_lea.sflag [#allocation9], 1
    %18 = vsyncpa %s17, 0
    loop: start=0, step=1, limit=6
    $region2: #{tpu_custom_call.1} parent=1 // loop_pre_header
      _
    $region3: #{tpu_custom_call.1} parent=1 // loop_header
      %s20 = sphi 0, %s24
      %p21 = scmp.ge.s32.totalorder %s20, 6
      %s27 = sphi 0, %s39
      %s28 = sphi 0, %s35
      %s29 = sphi 0, %s27
      %s30 = sphi 0, %s28
      %s31 = sphi 0, %s29
      %s32 = sphi 0, %s30
      %s42 = sphi 0, %s44
      %s45 = sphi 0, %s42
      %s46 = sphi 0, %s45
      %s62 = sphi 0, %s46
      %s66 = sphi 0, %s66
      %s68 = sphi 0, %s66
      %s69 = sphi 0, %s68
      %s83 = sphi 0, %s69
      %s87 = sphi 0, %s87
      %s89 = sphi 0, %s87
      %s90 = sphi 0, %s89
      %s104 = sphi 0, %s90
      %s112 = sphi 0, %s114
      %s115 = sphi 0, %s112
      %s116 = sphi 0, %s115
      %s132 = sphi 0, %s116
      %s140 = sphi 0, %s142
      %s143 = sphi 0, %s140
      %s144 = sphi 0, %s143
      %s160 = sphi 0, %s144
      %s168 = sphi 0, %s170
      %s171 = sphi 0, %s168
      %s172 = sphi 0, %s171
      %s188 = sphi 0, %s172
    $region4: #{tpu_custom_call.1} parent=1 // loop_header_branch
      %23 = sbr.rel (%p21) target = $region8
    $region5: #{tpu_custom_call.1} parent=1 // loop_body
      %s25 = ssub.s32 %s20, 1
      %s26 = ssub.s32 %s20, 2
      %s33 = sadd.s32 1, %s28
      %p34 = scmp.ge.s32.totalorder %s33, 4
      %s35 = scalar_select %p34, 0, %s33
      %s36 = sadd.s32 1, %s27
      %s37 = scalar_select %p34, %s36, %s27
      %p38 = scmp.ge.s32.totalorder %s37, 1
      %s39 = scalar_select %p38, 0, %s37
      %s40 = ssub.s32 %s27, %s39
      %p41 = scmp.eq.s32.totalorder %s40, 0
      %s43 = sadd.s32 %s42, 1
      %s44 = scalar_select %p41, %s42, %s43
      %p47 = pneg %p41
      %p48 = scmp.eq.s32.totalorder %s20, 3
      %p49 = por %p47, %p48
      %p50 = scmp.ne.s32.totalorder %s42, %s45
      %p51 = scmp.eq.s32.totalorder %s20, 0
      %p52 = por %p50, %p51
      %p53 = scmp.ne.s32.totalorder %s42, %s45
      %p54 = scmp.eq.s32.totalorder %s25, 3
      %p55 = por %p53, %p54
      %p56 = scmp.ne.s32.totalorder %s45, %s46
      %p57 = scmp.eq.s32.totalorder %s25, 0
      %p58 = por %p56, %p57
      %p59 = scmp.ne.s32.totalorder %s45, %s46
      %p60 = scmp.eq.s32.totalorder %s26, 3
      %p61 = por %p59, %p60
      %p63 = scmp.ne.s32.totalorder %s46, %s62
      %p64 = scmp.eq.s32.totalorder %s26, 0
      %p65 = por %p63, %p64
      %s67 = sadd.s32 %s66, 1
      %p70 = scmp.eq.s32.totalorder %s20, 3
      %p71 = scmp.ne.s32.totalorder %s66, %s68
      %p72 = scmp.eq.s32.totalorder %s20, 0
      %p73 = por %p71, %p72
      %p74 = scmp.ne.s32.totalorder %s66, %s68
      %p75 = scmp.eq.s32.totalorder %s25, 3
      %p76 = por %p74, %p75
      %p77 = scmp.ne.s32.totalorder %s68, %s69
      %p78 = scmp.eq.s32.totalorder %s25, 0
      %p79 = por %p77, %p78
      %p80 = scmp.ne.s32.totalorder %s68, %s69
      %p81 = scmp.eq.s32.totalorder %s26, 3
      %p82 = por %p80, %p81
      %p84 = scmp.ne.s32.totalorder %s69, %s83
      %p85 = scmp.eq.s32.totalorder %s26, 0
      %p86 = por %p84, %p85
      %s88 = sadd.s32 %s87, 1
      %p91 = scmp.eq.s32.totalorder %s20, 3
      %p92 = scmp.ne.s32.totalorder %s87, %s89
      %p93 = scmp.eq.s32.totalorder %s20, 0
      %p94 = por %p92, %p93
      %p95 = scmp.ne.s32.totalorder %s87, %s89
      %p96 = scmp.eq.s32.totalorder %s25, 3
      %p97 = por %p95, %p96
      %p98 = scmp.ne.s32.totalorder %s89, %s90
      %p99 = scmp.eq.s32.totalorder %s25, 0
      %p100 = por %p98, %p99
      %p101 = scmp.ne.s32.totalorder %s89, %s90
      %p102 = scmp.eq.s32.totalorder %s26, 3
      %p103 = por %p101, %p102
      %p105 = scmp.ne.s32.totalorder %s90, %s104
      %p106 = scmp.eq.s32.totalorder %s26, 0
      %p107 = por %p105, %p106
      %s108 = ssub.s32 %s28, %s35
      %s109 = ssub.s32 %s27, %s39
      %s110 = sor.u32 %s108, %s109
      %p111 = scmp.eq.s32.totalorder %s110, 0
      %s113 = sadd.s32 %s112, 1
      %s114 = scalar_select %p111, %s112, %s113
      %p117 = pneg %p111
      %p118 = scmp.eq.s32.totalorder %s20, 3
      %p119 = por %p117, %p118
      %p120 = scmp.ne.s32.totalorder %s112, %s115
      %p121 = scmp.eq.s32.totalorder %s20, 0
      %p122 = por %p120, %p121
      %p123 = scmp.ne.s32.totalorder %s112, %s115
      %p124 = scmp.eq.s32.totalorder %s25, 3
      %p125 = por %p123, %p124
      %p126 = scmp.ne.s32.totalorder %s115, %s116
      %p127 = scmp.eq.s32.totalorder %s25, 0
      %p128 = por %p126, %p127
      %p129 = scmp.ne.s32.totalorder %s115, %s116
      %p130 = scmp.eq.s32.totalorder %s26, 3
      %p131 = por %p129, %p130
      %p133 = scmp.ne.s32.totalorder %s116, %s132
      %p134 = scmp.eq.s32.totalorder %s26, 0
      %p135 = por %p133, %p134
      %s136 = ssub.s32 %s28, %s35
      %s137 = ssub.s32 %s27, %s39
      %s138 = sor.u32 %s136, %s137
      %p139 = scmp.eq.s32.totalorder %s138, 0
      %s141 = sadd.s32 %s140, 1
      %s142 = scalar_select %p139, %s140, %s141
      %p145 = pneg %p139
      %p146 = scmp.eq.s32.totalorder %s20, 3
      %p147 = por %p145, %p146
      %p148 = scmp.ne.s32.totalorder %s140, %s143
      %p149 = scmp.eq.s32.totalorder %s20, 0
      %p150 = por %p148, %p149
      %p151 = scmp.ne.s32.totalorder %s140, %s143
      %p152 = scmp.eq.s32.totalorder %s25, 3
      %p153 = por %p151, %p152
      %p154 = scmp.ne.s32.totalorder %s143, %s144
      %p155 = scmp.eq.s32.totalorder %s25, 0
      %p156 = por %p154, %p155
      %p157 = scmp.ne.s32.totalorder %s143, %s144
      %p158 = scmp.eq.s32.totalorder %s26, 3
      %p159 = por %p157, %p158
      %p161 = scmp.ne.s32.totalorder %s144, %s160
      %p162 = scmp.eq.s32.totalorder %s26, 0
      %p163 = por %p161, %p162
      %s164 = ssub.s32 %s28, %s35
      %s165 = ssub.s32 %s27, %s39
      %s166 = sor.u32 %s164, %s165
      %p167 = scmp.eq.s32.totalorder %s166, 0
      %s169 = sadd.s32 %s168, 1
      %s170 = scalar_select %p167, %s168, %s169
      %p173 = pneg %p167
      %p174 = scmp.eq.s32.totalorder %s20, 3
      %p175 = por %p173, %p174
      %p176 = scmp.ne.s32.totalorder %s168, %s171
      %p177 = scmp.eq.s32.totalorder %s20, 0
      %p178 = por %p176, %p177
      %p179 = scmp.ne.s32.totalorder %s168, %s171
      %p180 = scmp.eq.s32.totalorder %s25, 3
      %p181 = por %p179, %p180
      %p182 = scmp.ne.s32.totalorder %s171, %s172
      %p183 = scmp.eq.s32.totalorder %s25, 0
      %p184 = por %p182, %p183
      %p185 = scmp.ne.s32.totalorder %s171, %s172
      %p186 = scmp.eq.s32.totalorder %s26, 3
      %p187 = por %p185, %p186
      %p189 = scmp.ne.s32.totalorder %s172, %s188
      %p190 = scmp.eq.s32.totalorder %s26, 0
      %p191 = por %p189, %p190
      %p192 = scmp.le.s32.totalorder 1, %s20
      %p193 = scmp.lt.s32.totalorder %s20, 5
      %p194 = pnand %p192, %p193
      %p195 = pneg %p194
      // Predicated region
      $region9: #{tpu_custom_call.1} parent=5 // pred_check
        _
      $region10: #{tpu_custom_call.1} parent=5 // pred_check_branch
        %197 = sbr.rel (%p194) target = $region12
      $region11: #{tpu_custom_call.1} parent=5 // pred_region
        %s198 = ssub.s32 %s20, 1
        // Predicated region
        $region13: #{tpu_custom_call.1} parent=11 // pred_check
          %p199 = pneg %p58
        $region14: #{tpu_custom_call.1} parent=11 // pred_check_branch
          %201 = sbr.rel (%p199) target = $region16
        $region15: #{tpu_custom_call.1} parent=11 // pred_region
          %s203 = ssub.s32 128, 128
          %204 = vsyncadd [#allocation3], %s203
          %s205 = smul.addr %s29, 128
          %s206 = scalar_lea.hbm %s0, %s205
          %s208 = sshll.u32 [#allocation2], 4
          %s209 = int_to_ptr.vmem [resolvable:$true] %s208
          %211 = dma.hbm_to_vmem [thread:$0]  %s206, 128, %s209, [#allocation3]
        $region16: #{tpu_custom_call.1} parent=11 // pred_fallthru
          _
        // Predicated region
        $region17: #{tpu_custom_call.1} parent=11 // pred_check
          %p212 = pneg %p79
        $region18: #{tpu_custom_call.1} parent=11 // pred_check_branch
          %214 = sbr.rel (%p212) target = $region20
        $region19: #{tpu_custom_call.1} parent=11 // pred_region
          %s216 = ssub.s32 1024, 1024
          %217 = vsyncadd [#allocation6], %s216
          %s218 = sshll.u32 [#allocation5], 4
          %s219 = int_to_ptr.vmem [resolvable:$true] %s218
          %224 = dma.hbm_to_vmem [thread:$0]  %s1, 1024, %s219, [#allocation6], 64, 64, 4
        $region20: #{tpu_custom_call.1} parent=11 // pred_fallthru
          _
        // Predicated region
        $region21: #{tpu_custom_call.1} parent=11 // pred_check
          %p225 = pneg %p100
        $region22: #{tpu_custom_call.1} parent=11 // pred_check_branch
          %227 = sbr.rel (%p225) target = $region24
        $region23: #{tpu_custom_call.1} parent=11 // pred_region
          _
        $region24: #{tpu_custom_call.1} parent=11 // pred_fallthru
          _
      $region12: #{tpu_custom_call.1} parent=5 // pred_fallthru
        _
      %p228 = scmp.lt.s32.totalorder %s20, 4
      // Predicated region
      $region25: #{tpu_custom_call.1} parent=5 // pred_check
        %p229 = pneg %p228
      $region26: #{tpu_custom_call.1} parent=5 // pred_check_branch
        %231 = sbr.rel (%p229) target = $region28
      $region27: #{tpu_custom_call.1} parent=5 // pred_region
        _
      $region28: #{tpu_custom_call.1} parent=5 // pred_fallthru
        _
      %p232 = scmp.le.s32.totalorder 1, %s20
      %p233 = scmp.lt.s32.totalorder %s20, 5
      %p234 = pnand %p232, %p233
      %p235 = pneg %p234
      // Predicated region
      $region29: #{tpu_custom_call.1} parent=5 // pred_check
        _
      $region30: #{tpu_custom_call.1} parent=5 // pred_check_branch
        %237 = sbr.rel (%p234) target = $region32
      $region31: #{tpu_custom_call.1} parent=5 // pred_region
        %s238 = ssub.s32 %s20, 1
        // Predicated region
        $region33: #{tpu_custom_call.1} parent=31 // pred_check
          %p239 = pneg %p58
        $region34: #{tpu_custom_call.1} parent=31 // pred_check_branch
          %241 = sbr.rel (%p239) target = $region36
        $region35: #{tpu_custom_call.1} parent=31 // pred_region
          %242 = dma.done [#allocation3], 128
        $region36: #{tpu_custom_call.1} parent=31 // pred_fallthru
          _
        // Predicated region
        $region37: #{tpu_custom_call.1} parent=31 // pred_check
          %p243 = pneg %p79
        $region38: #{tpu_custom_call.1} parent=31 // pred_check_branch
          %245 = sbr.rel (%p243) target = $region40
        $region39: #{tpu_custom_call.1} parent=31 // pred_region
          %246 = dma.done [#allocation6], 1024
        $region40: #{tpu_custom_call.1} parent=31 // pred_fallthru
          _
        %p247 = pneg %p58
        %p248 = pneg %p55
        %p249 = pneg %p79
        %p250 = pneg %p76
        %p251 = pneg %p100
        %p252 = pneg %p97
        %p253 = pneg %p128
        %p254 = pneg %p125
        %s255 = sand.u32 %s115, 1
        %s256 = scalar_lea.sflag [#allocation4], %s255
        %s257 = sand.u32 %s115, 1
        %s258 = smul.addr %s257, 4
        %s259 = scalar_lea.vmem [#allocation7], %s258
        %p260 = pneg %p156
        %p261 = pneg %p153
        %s262 = sand.u32 %s25, 1
        %s263 = scalar_lea.sflag [#allocation9], %s262
        %s264 = sand.u32 %s143, 1
        %s265 = smul.addr %s264, 4
        %s266 = scalar_lea.vmem [#allocation8], %s265
        %p267 = pneg %p184
        %p268 = pneg %p181
        %s269 = sand.u32 %s25, 1
        %s270 = scalar_lea.sflag [#allocation9], %s269
        %s271 = sand.u32 %s171, 1
        %s272 = smul.addr %s271, 4
        %s273 = scalar_lea.vmem [#allocation10], %s272
        %v275 = vld [vmem:[#allocation2] sm:$0xff]
        %v276 = vpack.c.bf16 %v275, %v275
        %s277 = smul.u32 %s30, 4
        %s278 = smul.addr %s277, 4
        %s279 = scalar_lea.vmem [#allocation5], %s278
        %v280 = vld [vmem:[%s279] sm:$0xf]
        %v281 = vld [vmem:[%s279 + $0x4] sm:$0xf]
        %v282 = vld [vmem:[%s279 + $0x8] sm:$0xf]
        %v283 = vld [vmem:[%s279 + $0xc] sm:$0xf]
        %s284 = scalar_lea.vmem %s2, %s30
        %v285 = vld [vmem:[%s284] sm:$0x1]
        %v287 = vlaneseq
        %v288 = vshrl.u32 %v287, 7
        %v289 = vsub.s32 0, %v288
        %v290 = vrot.slane %v285, %v289
        %v296 = vunpack.c.l.b16 %v280
        %v297 = vunpack.c.l.b16 %v281
        %v298 = vunpack.c.l.b16 %v282
        %v299 = vunpack.c.l.b16 %v283
        %v300 = vpack.c.b16 %v297, %v296
        %v301 = vpack.c.b16 %v299, %v298
        %vm304 = vcmask 261120
        %v306 = vsel %vm304, %v276, 0
        %308 = vmatprep.subr.bf16.mxu0 0
        %309 = vmatpush1.bf16.msra.mxu0 %v300
        %310 = vmatprep.subr.bf16.mxu0 0
        %311 = vmatpush1.bf16.msra.mxu0 %v301
        %312 = vmatprep.subr.bf16.mxu0 0
        %313 = vmatpush1.bf16.msra.mxu0 0
        %314 = vmatprep.subr.bf16.mxu0 0
        %315 = vmatpush1.bf16.msra.mxu0 0
        %316 = vmatprep.subr.bf16.mxu0 0
        %317 = vmatpush1.bf16.msra.mxu0 0
        %318 = vmatprep.subr.bf16.mxu0 0
        %319 = vmatpush1.bf16.msra.mxu0 0
        %320 = vmatprep.subr.bf16.mxu0 0
        %321 = vmatpush1.bf16.msra.mxu0 0
        %322 = vmatprep.subr.bf16.mxu0 0
        %323 = vmatpush1.bf16.msra.mxu0 0
        %324 = vmatprep.subr.bf16.mxu0 0
        %325 = vmatpush1.bf16.msra.mxu0 0
        %326 = vmatprep.subr.bf16.mxu0 0
        %327 = vmatpush1.bf16.msra.mxu0 0
        %328 = vmatprep.subr.bf16.mxu0 0
        %329 = vmatpush1.bf16.msra.mxu0 0
        %330 = vmatprep.subr.bf16.mxu0 0
        %331 = vmatpush1.bf16.msra.mxu0 0
        %332 = vmatprep.subr.bf16.mxu0 0
        %333 = vmatpush1.bf16.msra.mxu0 0
        %334 = vmatprep.subr.bf16.mxu0 0
        %335 = vmatpush1.bf16.msra.mxu0 0
        %336 = vmatprep.subr.bf16.mxu0 0
        %337 = vmatpush1.bf16.msra.mxu0 0
        %338 = vmatprep.subr.bf16.mxu0 0
        %339 = vmatpush1.bf16.msra.mxu0 0
        %340 = vmatprep.mubr.bf16.mxu0 0
        %341 = vmatmul.mubr.bf16.gmra.mrb[0].mxu0 %v306
        %v342 = vpop.f32.mrb[0].mxu0
        %v343 = vadd.f32 %v290, %v342
        %v344 = vpop.f32.mrb[0].mxu0
        %v345 = vpop.f32.mrb[0].mxu0
        %v346 = vpop.f32.mrb[0].mxu0
        %347 = vdwg.mxu0
        %v348 = vpack.c.bf16 %v343, %v343
        %vm349 = vcmask 125952
        %350 = vst.msk [vmem:[%s259] sm:$0xf] %vm349, %v348
        %v352 = vunpack.c.l.b16 %v348
        %v353 = vpack.c.b16 %v352, %v352
        %354 = vrot.lane.b32.xlu0 %v353, 112
        %v355 = vpop.permute.xlu0 %354
        %357 = vst.msk [vmem:[%s266] sm:$0xf] %vm349, %v355
        %358 = vrot.lane.b32.xlu0 %v353, 96
        %v359 = vpop.permute.xlu0 %358
        %361 = vst.msk [vmem:[%s273] sm:$0xf] %vm349, %v359
        %s362 = sand.u32 %s115, 1
        %s363 = scalar_lea.sflag [#allocation4], %s362
        %s364 = sand.u32 %s115, 1
        %s365 = smul.addr %s364, 4
        %s366 = scalar_lea.vmem [#allocation7], %s365
        %s367 = sand.u32 %s25, 1
        %s368 = scalar_lea.sflag [#allocation9], %s367
        %s369 = sand.u32 %s143, 1
        %s370 = smul.addr %s369, 4
        %s371 = scalar_lea.vmem [#allocation8], %s370
        %s372 = sand.u32 %s25, 1
        %s373 = scalar_lea.sflag [#allocation9], %s372
        %s374 = sand.u32 %s171, 1
        %s375 = smul.addr %s374, 4
        %s376 = scalar_lea.vmem [#allocation10], %s375
        // Predicated region
        $region41: #{tpu_custom_call.1} parent=31 // pred_check
          %p377 = pneg %p125
        $region42: #{tpu_custom_call.1} parent=31 // pred_check_branch
          %379 = sbr.rel (%p377) target = $region44
        $region43: #{tpu_custom_call.1} parent=31 // pred_region
          %s381 = ssub.s32 64, 64
          %382 = vsyncadd %s363, %s381
          %s383 = sadd.s32 %s29, %s30
          %s384 = smul.addr %s383, 64
          %s385 = scalar_lea.hbm %s3, %s384
          %s387 = sshll.u32 %s366, 4
          %s388 = int_to_ptr.vmem [resolvable:$true] %s387
          %390 = dma.vmem_to_hbm [thread:$0]  %s388, 64, %s385, %s363
        $region44: #{tpu_custom_call.1} parent=31 // pred_fallthru
          _
        // Predicated region
        $region45: #{tpu_custom_call.1} parent=31 // pred_check
          %p391 = pneg %p153
        $region46: #{tpu_custom_call.1} parent=31 // pred_check_branch
          %393 = sbr.rel (%p391) target = $region48
        $region47: #{tpu_custom_call.1} parent=31 // pred_region
          %s395 = ssub.s32 64, 64
          %396 = vsyncadd %s368, %s395
          %s397 = sadd.s32 %s29, %s30
          %s398 = smul.addr %s397, 64
          %s399 = scalar_lea.hbm %s4, %s398
          %s401 = sshll.u32 %s371, 4
          %s402 = int_to_ptr.vmem [resolvable:$true] %s401
          %404 = dma.vmem_to_hbm [thread:$0]  %s402, 64, %s399, %s368
        $region48: #{tpu_custom_call.1} parent=31 // pred_fallthru
          _
        // Predicated region
        $region49: #{tpu_custom_call.1} parent=31 // pred_check
          %p405 = pneg %p181
        $region50: #{tpu_custom_call.1} parent=31 // pred_check_branch
          %407 = sbr.rel (%p405) target = $region52
        $region51: #{tpu_custom_call.1} parent=31 // pred_region
          %s409 = ssub.s32 64, 64
          %410 = vsyncadd %s373, %s409
          %s411 = sadd.s32 %s29, %s30
          %s412 = smul.addr %s411, 64
          %s413 = scalar_lea.hbm %s5, %s412
          %s415 = sshll.u32 %s376, 4
          %s416 = int_to_ptr.vmem [resolvable:$true] %s415
          %418 = dma.vmem_to_hbm [thread:$0]  %s416, 64, %s413, %s373
        $region52: #{tpu_custom_call.1} parent=31 // pred_fallthru
          _
      $region32: #{tpu_custom_call.1} parent=5 // pred_fallthru
        _
      %p419 = scmp.le.s32.totalorder 2, %s20
      // Predicated region
      $region53: #{tpu_custom_call.1} parent=5 // pred_check
        %p420 = pneg %p419
      $region54: #{tpu_custom_call.1} parent=5 // pred_check_branch
        %422 = sbr.rel (%p420) target = $region56
      $region55: #{tpu_custom_call.1} parent=5 // pred_region
        %s423 = ssub.s32 %s20, 2
        // Predicated region
        $region57: #{tpu_custom_call.1} parent=55 // pred_check
          %p424 = pneg %p131
        $region58: #{tpu_custom_call.1} parent=55 // pred_check_branch
          %426 = sbr.rel (%p424) target = $region60
        $region59: #{tpu_custom_call.1} parent=55 // pred_region
          %s427 = sand.u32 %s116, 1
          %s428 = scalar_lea.sflag [#allocation4], %s427
          %s429 = sand.u32 %s116, 1
          %s430 = smul.addr %s429, 4
          %s431 = scalar_lea.vmem [#allocation7], %s430
          %432 = dma.done %s428, 64
        $region60: #{tpu_custom_call.1} parent=55 // pred_fallthru
          _
        // Predicated region
        $region61: #{tpu_custom_call.1} parent=55 // pred_check
          %p433 = pneg %p159
        $region62: #{tpu_custom_call.1} parent=55 // pred_check_branch
          %435 = sbr.rel (%p433) target = $region64
        $region63: #{tpu_custom_call.1} parent=55 // pred_region
          %s436 = sand.u32 %s26, 1
          %s437 = scalar_lea.sflag [#allocation9], %s436
          %s438 = sand.u32 %s144, 1
          %s439 = smul.addr %s438, 4
          %s440 = scalar_lea.vmem [#allocation8], %s439
          %441 = dma.done %s437, 64
        $region64: #{tpu_custom_call.1} parent=55 // pred_fallthru
          _
        // Predicated region
        $region65: #{tpu_custom_call.1} parent=55 // pred_check
          %p442 = pneg %p187
        $region66: #{tpu_custom_call.1} parent=55 // pred_check_branch
          %444 = sbr.rel (%p442) target = $region68
        $region67: #{tpu_custom_call.1} parent=55 // pred_region
          %s445 = sand.u32 %s26, 1
          %s446 = scalar_lea.sflag [#allocation9], %s445
          %s447 = sand.u32 %s172, 1
          %s448 = smul.addr %s447, 4
          %s449 = scalar_lea.vmem [#allocation10], %s448
          %450 = dma.done %s446, 64
        $region68: #{tpu_custom_call.1} parent=55 // pred_fallthru
          _
      $region56: #{tpu_custom_call.1} parent=5 // pred_fallthru
        _
    $region6: #{tpu_custom_call.1} parent=1 // loop_footer
      %s24 = sadd.s32 1, %s20
    $region7: #{tpu_custom_call.1} parent=1 // loop_footer_branch
      %19 = sbr.rel target = $region3
    $region8: #{tpu_custom_call.1} parent=1 // loop_exit
      _
    %451 = vsyncpa [#allocation3], 1
    %s452 = scalar_lea.sflag [#allocation3], 1
    %453 = vsyncpa %s452, 1
    %454 = vsyncpa [#allocation6], 1
    %455 = vsyncpa [#allocation4], 1
    %s456 = scalar_lea.sflag [#allocation4], 1
    %457 = vsyncpa %s456, 1
    %458 = vsyncpa [#allocation9], 1
    %s459 = scalar_lea.sflag [#allocation9], 1
    %460 = vsyncpa %s459, 1

</llo_original>
